<compile_context>
chip_gen: v7x
topology: tpu7x:2x2x1
jax: 0.10.0
libtpu: 0.0.40
codegen_flags: <defaults>
</compile_context>

<pallas_src>
import math

import jax
import jax.numpy as jnp
from jax.experimental import pallas as pl
from jax.experimental.pallas import tpu as pltpu


def _round_up(v, m):
    return ((v + m - 1) // m) * m


# --------------------------- Pass 1: MLP + normalize ---------------------------
def _mlp_kernel(x_ref, w_ref, b_ref, h32_ref, h16_ref):
    """Grid = (src_tiles,).  One src tile per step; h computed exactly once."""
    # Linear (bf16 operands, f32 MXU accumulation) + ReLU.
    z = jnp.dot(x_ref[...], w_ref[...], preferred_element_type=jnp.float32)
    z = z + b_ref[...]                                   # bias broadcast [1, Dp]
    h = jnp.maximum(z, 0.0)

    # F.normalize(p=2, dim=1): h / max(||h||, 1e-12) == h * rsqrt(max(||h||^2, 1e-24)).
    sq = jnp.sum(h * h, axis=1, keepdims=True)
    h = h * jax.lax.rsqrt(jnp.maximum(sq, 1e-24))        # f32 everywhere (v5e-safe)

    h32_ref[...] = h                                     # exact h (dst embeddings)
    h16_ref[...] = h.astype(h16_ref.dtype)               # bf16 copy for aggregation


# --------------------------- Pass 2: mean aggregation --------------------------
def _agg_kernel(adj_ref, h_ref, mean_ref, acc_ref, deg_ref):
    """Grid = (dst_tiles, src_tiles); src is the reduction axis (last)."""
    j = pl.program_id(1)

    @pl.when(j == 0)
    def _():
        acc_ref[...] = jnp.zeros_like(acc_ref)
        deg_ref[...] = jnp.zeros_like(deg_ref)

    # adj stored int8 in HBM; upcast to bf16 for the MXU (exact: values are 0/1).
    adj_bf16 = adj_ref[...].astype(jnp.bfloat16)
    acc_ref[...] += jnp.dot(adj_bf16, h_ref[...],
                            preferred_element_type=jnp.float32)
    # In-degree rides the otherwise-idle XLU slot; exact integer sums in f32.
    deg_ref[...] += jnp.sum(adj_ref[...].astype(jnp.float32),
                            axis=1, keepdims=True)

    @pl.when(j == pl.num_programs(1) - 1)
    def _():
        inv_deg = 1.0 / jnp.maximum(deg_ref[...], 1.0)   # [tile, 1] (zero-deg -> 0)
        mean_ref[...] = acc_ref[...] * inv_deg           # broadcast multiply


def encoder_forward(x, w, b, adj, *, tile=256, matmul_dtype=jnp.bfloat16):
    """x:[N_src,in_dim] f32, w:[in_dim,out_dim] f32 (already W^T vs torch),
       b:[1,out_dim] f32, adj:[N_dst,N_src] (0/1 dense block adjacency)
       ->  (h_dst:[N_dst,out_dim] f32, mean_h:[N_dst,out_dim] f32)"""
    n_src, in_dim = x.shape
    out_dim = w.shape[1]
    n_dst = adj.shape[0]
    assert n_dst <= n_src, "DGL block: dst nodes must be a prefix of src nodes"
    assert tile % 128 == 0, "tile must be a multiple of 128"

    in_pad = _round_up(in_dim, 128)
    out_pad = _round_up(out_dim, 128)

    # dst tile: prefer `tile`, but if that yields a single dst tile, shrink so the
    # "parallel" dst axis can still split across v7x's two TensorCores (and avoid
    # over-padding tiny dst sets).  Never below the 128-lane minimum.
    tile_src = tile
    tile_dst = tile
    if pl.cdiv(n_dst, tile_dst) < 2:
        tile_dst = max(128, _round_up(pl.cdiv(n_dst, 2), 128))

    n_src_pad = _round_up(n_src, tile_src)
    n_dst_pad = _round_up(n_dst, tile_dst)
    grid_src = n_src_pad // tile_src
    grid_dst = n_dst_pad // tile_dst

    # Zero-padded operands.  Matmul operands bf16 (f32 accumulate on MXU); bias
    # stays f32; adj stored int8 (0/1) in HBM.
    # NOTE: padded src rows (zero x rows) still yield h = relu(b)/||relu(b)|| != 0
    # after bias + normalize; this is harmless ONLY because their adj columns are
    # zero-padded, so they never contribute to the aggregation.  Keep it that way.
    xp = jnp.zeros((n_src_pad, in_pad), matmul_dtype)
    xp = xp.at[:n_src, :in_dim].set(x.astype(matmul_dtype))
    wp = jnp.zeros((in_pad, out_pad), matmul_dtype)
    wp = wp.at[:in_dim, :out_dim].set(w.astype(matmul_dtype))
    bp = jnp.zeros((1, out_pad), jnp.float32).at[:, :out_dim].set(b)
    adjp = jnp.zeros((n_dst_pad, n_src_pad), jnp.int8)
    adjp = adjp.at[:n_dst, :n_src].set(adj.astype(jnp.int8))

    vmem_limit = 32 * 1024 * 1024   # fits v7x's 64 MiB physical; raises v5e default

    # ---------------- Pass 1: h = normalize(relu(x @ W + b)), computed once ----
    h32, h16 = pl.pallas_call(
        _mlp_kernel,
        out_shape=(jax.ShapeDtypeStruct((n_src_pad, out_pad), jnp.float32),
                   jax.ShapeDtypeStruct((n_src_pad, out_pad), matmul_dtype)),
        grid_spec=pltpu.PrefetchScalarGridSpec(
            num_scalar_prefetch=0,
            grid=(grid_src,),
            in_specs=[
                pl.BlockSpec((tile_src, in_pad), lambda j: (j, 0)),    # x
                pl.BlockSpec((in_pad, out_pad), lambda j: (0, 0)),     # w (resident)
                pl.BlockSpec((1, out_pad), lambda j: (0, 0)),          # b (resident)
            ],
            out_specs=(
                pl.BlockSpec((tile_src, out_pad), lambda j: (j, 0)),   # h f32
                pl.BlockSpec((tile_src, out_pad), lambda j: (j, 0)),   # h bf16
            ),
        ),
        compiler_params=pltpu.CompilerParams(
            dimension_semantics=("parallel",),
            vmem_limit_bytes=vmem_limit,
        ),
        cost_estimate=pl.CostEstimate(
            flops=int(2 * n_src_pad * in_pad * out_pad),
            transcendentals=int(n_src_pad),                     # one rsqrt per row
            bytes_accessed=int(xp.size * 2 + wp.size * 2 + bp.size * 4
                               + n_src_pad * out_pad * (4 + 2)),
        ),
    )(xp, wp, bp)

    # ---------------- Pass 2: mean aggregation (adj @ h) / max(deg, 1) ---------
    mean_pad = pl.pallas_call(
        _agg_kernel,
        out_shape=jax.ShapeDtypeStruct((n_dst_pad, out_pad), jnp.float32),
        grid_spec=pltpu.PrefetchScalarGridSpec(
            num_scalar_prefetch=0,
            grid=(grid_dst, grid_src),
            in_specs=[
                pl.BlockSpec((tile_dst, tile_src), lambda i, j: (i, j)),   # adj int8
                pl.BlockSpec((tile_src, out_pad), lambda i, j: (j, 0)),    # h bf16
            ],
            out_specs=pl.BlockSpec((tile_dst, out_pad), lambda i, j: (i, 0)),
            scratch_shapes=[pltpu.VMEM((tile_dst, out_pad), jnp.float32),  # acc
                            pltpu.VMEM((tile_dst, 1), jnp.float32)],       # deg
        ),
        compiler_params=pltpu.CompilerParams(
            dimension_semantics=("parallel", "arbitrary"),
            vmem_limit_bytes=vmem_limit,
        ),
        cost_estimate=pl.CostEstimate(
            flops=int(2 * n_dst_pad * n_src_pad * out_pad),
            transcendentals=0,
            bytes_accessed=int(adjp.size * 1                      # int8 adj
                               + grid_dst * n_src_pad * out_pad * 2  # bf16 h re-read
                               + n_dst_pad * out_pad * 4),           # f32 mean out
        ),
    )(adjp, h16)

    return h32[:n_dst, :out_dim], mean_pad[:n_dst, :out_dim]


def _reference(x, w, b, adj, matmul_dtype=jnp.bfloat16):
    """Pure-JAX reference with the same bf16-operand / f32-accumulate math."""
    deg = jnp.sum(adj, axis=1, keepdims=True)
    z = jnp.dot(x.astype(matmul_dtype), w.astype(matmul_dtype),
                preferred_element_type=jnp.float32) + b
    h = jnp.maximum(z, 0.0)
    sq = jnp.sum(h * h, axis=1, keepdims=True)
    h = h * jax.lax.rsqrt(jnp.maximum(sq, 1e-24))
    h16 = h.astype(matmul_dtype)
    agg = jnp.dot(adj.astype(matmul_dtype), h16, preferred_element_type=jnp.float32)
    mean_h = agg / jnp.maximum(deg, 1.0)
    n_dst = adj.shape[0]
    return h[:n_dst], mean_h


if __name__ == "__main__":
    key = jax.random.PRNGKey(0)
    k_x, k_w, k_b, k_adj = jax.random.split(key, 4)

    # Small but multi-tile problem: 300 src nodes, 160 dst nodes,
    # in_dim=96, out_dim=48 -> pass 1 grid (2 src tiles), pass 2 grid (2 dst, 2 src).
    n_src, n_dst, in_dim, out_dim = 300, 160, 96, 48

    x = jax.random.normal(k_x, (n_src, in_dim), dtype=jnp.float32)

    # Deterministic Linear params (kaiming-uniform-ish scale, like nn.Linear).
    bound = 1.0 / math.sqrt(in_dim)
    w = jax.random.uniform(k_w, (in_dim, out_dim), jnp.float32, -bound, bound)
    b = jax.random.uniform(k_b, (1, out_dim), jnp.float32, -bound, bound)

    # Deterministic random bipartite block: src -> dst edges (dst = first rows).
    adj = (jax.random.uniform(k_adj, (n_dst, n_src)) < 0.3).astype(jnp.float32)

    h_dst, mean_h = encoder_forward(x, w, b, adj)
    jax.block_until_ready((h_dst, mean_h))

    h_ref, mean_ref = _reference(x, w, b, adj)
    assert h_dst.shape == (n_dst, out_dim)
    assert mean_h.shape == (n_dst, out_dim)
    assert jnp.allclose(h_dst, h_ref, atol=2e-5, rtol=2e-5)
    assert jnp.allclose(mean_h, mean_ref, atol=2e-5, rtol=2e-5)

    print("KERNEL_OK")
</pallas_src>

<mosaic_0001>
module attributes {stable_mosaic.version = 11 : i64} {
  func.func @_mlp_kernel(%arg0: i32, %arg1: memref<256x128xbf16, #tpu.memory_space<vmem>>, %arg2: memref<128x128xbf16, #tpu.memory_space<vmem>>, %arg3: memref<1x128xf32, #tpu.memory_space<vmem>>, %arg4: memref<256x128xf32, #tpu.memory_space<vmem>>, %arg5: memref<256x128xbf16, #tpu.memory_space<vmem>>) attributes {dimension_semantics = [#tpu.dimension_semantics<parallel>], iteration_bounds = array<i64: 2>, scalar_prefetch = 0 : i64, scratch_operands = 0 : i64, tpu.core_type = #tpu.core_type<tc>, window_params = [{transform_indices = @transform_0, window_bounds = array<i64: 256, 128>}, {pipeline_mode = #tpu.pipeline_mode<synchronous>, transform_indices = @transform_1, window_bounds = array<i64: 128, 128>}, {pipeline_mode = #tpu.pipeline_mode<synchronous>, transform_indices = @transform_2, window_bounds = array<i64: 1, 128>}, {transform_indices = @transform_3, window_bounds = array<i64: 256, 128>}, {transform_indices = @transform_4, window_bounds = array<i64: 256, 128>}]} {
    %c0 = arith.constant 0 : index
    %c0_0 = arith.constant 0 : index
    %0 = vector.load %arg1[%c0, %c0_0] : memref<256x128xbf16, #tpu.memory_space<vmem>>, vector<256x128xbf16>
    %c0_1 = arith.constant 0 : index
    %c0_2 = arith.constant 0 : index
    %1 = vector.load %arg2[%c0_1, %c0_2] : memref<128x128xbf16, #tpu.memory_space<vmem>>, vector<128x128xbf16>
    %cst = arith.constant dense<0.000000e+00> : vector<256x128xf32>
    %2 = tpu.matmul %0, %1, %cst {dimension_numbers = #tpu.dot_dimension_numbers<[1], [0], [0], [1], [0, 0, 1, 1], [], []>} : vector<256x128xbf16>, vector<128x128xbf16>, vector<256x128xf32> -> vector<256x128xf32>
    %c0_3 = arith.constant 0 : index
    %c0_4 = arith.constant 0 : index
    %3 = vector.load %arg3[%c0_3, %c0_4] : memref<1x128xf32, #tpu.memory_space<vmem>>, vector<1x128xf32>
    %4 = vector.broadcast %3 : vector<1x128xf32> to vector<256x128xf32>
    %5 = arith.addf %2, %4 : vector<256x128xf32>
    %cst_5 = arith.constant 0.000000e+00 : f32
    %6 = vector.broadcast %cst_5 : f32 to vector<256x128xf32>
    %7 = arith.maximumf %5, %6 : vector<256x128xf32>
    %8 = arith.mulf %7, %7 : vector<256x128xf32>
    %cst_6 = arith.constant dense<0.000000e+00> : vector<256xf32>
    %9 = vector.multi_reduction <add>, %8, %cst_6 [1] : vector<256x128xf32> to vector<256xf32>
    %10 = vector.shape_cast %9 : vector<256xf32> to vector<256x1xf32>
    %cst_7 = arith.constant 1.000000e-24 : f32
    %11 = vector.broadcast %cst_7 : f32 to vector<256x1xf32>
    %12 = arith.maximumf %10, %11 : vector<256x1xf32>
    %13 = math.rsqrt %12 : vector<256x1xf32>
    %14 = vector.broadcast %13 : vector<256x1xf32> to vector<256x128xf32>
    %15 = arith.mulf %7, %14 : vector<256x128xf32>
    %c0_8 = arith.constant 0 : index
    %c0_9 = arith.constant 0 : index
    %16 = vector.load %arg4[%c0_8, %c0_9] : memref<256x128xf32, #tpu.memory_space<vmem>>, vector<256x128xf32>
    tpu.vector_store %arg4[%c0_8, %c0_9], %15 {strides = array<i32>} : memref<256x128xf32, #tpu.memory_space<vmem>>, vector<256x128xf32>,
    %17 = arith.truncf %15 : vector<256x128xf32> to vector<256x128xbf16>
    %c0_10 = arith.constant 0 : index
    %c0_11 = arith.constant 0 : index
    %18 = vector.load %arg5[%c0_10, %c0_11] : memref<256x128xbf16, #tpu.memory_space<vmem>>, vector<256x128xbf16>
    tpu.vector_store %arg5[%c0_10, %c0_11], %17 {strides = array<i32>} : memref<256x128xbf16, #tpu.memory_space<vmem>>, vector<256x128xbf16>,
    return
  }
  func.func @transform_0(%arg0: i32) -> (i32, i32) {
    %c0_i32 = arith.constant 0 : i32
    %c0_i32_0 = arith.constant 0 : i32
    return %arg0, %c0_i32 : i32, i32
  }
  func.func @transform_1(%arg0: i32) -> (i32, i32) {
    %c0_i32 = arith.constant 0 : i32
    %c0_i32_0 = arith.constant 0 : i32
    %c0_i32_1 = arith.constant 0 : i32
    return %c0_i32, %c0_i32_0 : i32, i32
  }
  func.func @transform_2(%arg0: i32) -> (i32, i32) {
    %c0_i32 = arith.constant 0 : i32
    %c0_i32_0 = arith.constant 0 : i32
    %c0_i32_1 = arith.constant 0 : i32
    return %c0_i32, %c0_i32_0 : i32, i32
  }
  func.func @transform_3(%arg0: i32) -> (i32, i32) {
    %c0_i32 = arith.constant 0 : i32
    %c0_i32_0 = arith.constant 0 : i32
    return %arg0, %c0_i32 : i32, i32
  }
  func.func @transform_4(%arg0: i32) -> (i32, i32) {
    %c0_i32 = arith.constant 0 : i32
    %c0_i32_0 = arith.constant 0 : i32
    return %arg0, %c0_i32 : i32, i32
  }
}

</mosaic_0001>

<llo_original>
// kernel: tpu_custom_call.1
$region0: #{tpu_custom_call.1}
  #allocation0 [shape = 'u32[]', space=smem, size = 0x4, offset = 0x4, fixed_abs, tag = 'smem constant byte address 0x4 - core index']
  #allocation1 [shape = 'u32[144,128]{1,0:T(1,128)}', space=vmem, size = 0x12000, scoped, tag = 'internal scratch']
  %s0 = inlined_call_operand.hbm [shape: bf16[512,128], index: 0, kind: input, shape index: {}]
  %s1 = inlined_call_operand.hbm [shape: bf16[128,128], index: 1, kind: input, shape index: {}]
  %s2 = inlined_call_operand.vmem [shape: f32[1,128], index: 2, kind: input, shape index: {}]
  %s3 = inlined_call_operand.hbm [shape: f32[512,128], index: 3, kind: output, shape index: {0}]
  %s4 = inlined_call_operand.hbm [shape: bf16[512,128], index: 4, kind: output, shape index: {1}]
  %5 = xla_tuple %s3, %s4
  %s6 = sld [smem:[#allocation0]]
  $region61: #{tpu_custom_call.1} parent=0
    _
  %s8 = ssub.s32 1, %s6
  %s9 = scalar_select 0, %s8, %s6
  $region1: #{tpu_custom_call.1} parent=0
    #allocation2 [shape = 'u8[131072]{0}', space=vmem, size = 0x20000, scoped, tag = 'input window, operand 0']
    #allocation3 [shape = 's32[2]{0}', space=sflag, size = 0x8, scoped, tag = 'scoped memory for tpu_custom_call.1']
    #allocation4 [shape = 's32[2]{0}', space=sflag, size = 0x8, scoped, tag = 'scoped memory for tpu_custom_call.1']
    #allocation5 [shape = 'u8[32768]{0}', space=vmem, size = 0x8000, scoped, tag = 'input window, operand 1, single buffered']
    #allocation6 [shape = 's32[1]{0}', space=sflag, size = 0x4, scoped, tag = 'scoped memory for tpu_custom_call.1']
    #allocation7 [shape = 'u8[262144]{0}', space=vmem, size = 0x40000, scoped, tag = 'output window, operand 0']
    #allocation8 [shape = 'u8[131072]{0}', space=vmem, size = 0x20000, scoped, tag = 'output window, operand 1']
    #allocation9 [shape = 's32[2]{0}', space=sflag, size = 0x8, scoped, tag = 'scoped memory for tpu_custom_call.1']
    %10 = vsyncpa [#allocation3], 0
    %s11 = scalar_lea.sflag [#allocation3], 1
    %12 = vsyncpa %s11, 0
    %13 = vsyncpa [#allocation6], 0
    %14 = vsyncpa [#allocation4], 0
    %s15 = scalar_lea.sflag [#allocation4], 1
    %16 = vsyncpa %s15, 0
    %17 = vsyncpa [#allocation9], 0
    %s18 = scalar_lea.sflag [#allocation9], 1
    %19 = vsyncpa %s18, 0
    loop: start=0, step=1, limit=4
    $region2: #{tpu_custom_call.1} parent=1 // loop_pre_header
      _
    $region3: #{tpu_custom_call.1} parent=1 // loop_header
      %s21 = sphi 0, %s25
      %p22 = scmp.ge.s32.totalorder %s21, 4
      %s31 = sphi 0, %s33
      %s34 = sphi 0, %s31
      %s35 = sphi 0, %s34
      %s51 = sphi 0, %s35
      %s55 = sphi 0, %s55
      %s57 = sphi 0, %s55
      %s58 = sphi 0, %s57
      %s72 = sphi 0, %s58
      %s76 = sphi 0, %s76
      %s78 = sphi 0, %s76
      %s79 = sphi 0, %s78
      %s93 = sphi 0, %s79
      %s99 = sphi 0, %s101
      %s102 = sphi 0, %s99
      %s103 = sphi 0, %s102
      %s119 = sphi 0, %s103
      %s125 = sphi 0, %s127
      %s128 = sphi 0, %s125
      %s129 = sphi 0, %s128
      %s145 = sphi 0, %s129
    $region4: #{tpu_custom_call.1} parent=1 // loop_header_branch
      %24 = sbr.rel (%p22) target = $region8
    $region5: #{tpu_custom_call.1} parent=1 // loop_body
      %s26 = ssub.s32 %s21, 1
      %s27 = ssub.s32 %s21, 2
      %s28 = sadd.s32 %s21, 1
      %s29 = ssub.s32 %s21, %s28
      %p30 = scmp.eq.s32.totalorder %s29, 0
      %s32 = sadd.s32 %s31, 1
      %s33 = scalar_select %p30, %s31, %s32
      %p36 = pneg %p30
      %p37 = scmp.eq.s32.totalorder %s21, 1
      %p38 = por %p36, %p37
      %p39 = scmp.ne.s32.totalorder %s31, %s34
      %p40 = scmp.eq.s32.totalorder %s21, 0
      %p41 = por %p39, %p40
      %p42 = scmp.ne.s32.totalorder %s31, %s34
      %p43 = scmp.eq.s32.totalorder %s26, 1
      %p44 = por %p42, %p43
      %p45 = scmp.ne.s32.totalorder %s34, %s35
      %p46 = scmp.eq.s32.totalorder %s26, 0
      %p47 = por %p45, %p46
      %p48 = scmp.ne.s32.totalorder %s34, %s35
      %p49 = scmp.eq.s32.totalorder %s27, 1
      %p50 = por %p48, %p49
      %p52 = scmp.ne.s32.totalorder %s35, %s51
      %p53 = scmp.eq.s32.totalorder %s27, 0
      %p54 = por %p52, %p53
      %s56 = sadd.s32 %s55, 1
      %p59 = scmp.eq.s32.totalorder %s21, 1
      %p60 = scmp.ne.s32.totalorder %s55, %s57
      %p61 = scmp.eq.s32.totalorder %s21, 0
      %p62 = por %p60, %p61
      %p63 = scmp.ne.s32.totalorder %s55, %s57
      %p64 = scmp.eq.s32.totalorder %s26, 1
      %p65 = por %p63, %p64
      %p66 = scmp.ne.s32.totalorder %s57, %s58
      %p67 = scmp.eq.s32.totalorder %s26, 0
      %p68 = por %p66, %p67
      %p69 = scmp.ne.s32.totalorder %s57, %s58
      %p70 = scmp.eq.s32.totalorder %s27, 1
      %p71 = por %p69, %p70
      %p73 = scmp.ne.s32.totalorder %s58, %s72
      %p74 = scmp.eq.s32.totalorder %s27, 0
      %p75 = por %p73, %p74
      %s77 = sadd.s32 %s76, 1
      %p80 = scmp.eq.s32.totalorder %s21, 1
      %p81 = scmp.ne.s32.totalorder %s76, %s78
      %p82 = scmp.eq.s32.totalorder %s21, 0
      %p83 = por %p81, %p82
      %p84 = scmp.ne.s32.totalorder %s76, %s78
      %p85 = scmp.eq.s32.totalorder %s26, 1
      %p86 = por %p84, %p85
      %p87 = scmp.ne.s32.totalorder %s78, %s79
      %p88 = scmp.eq.s32.totalorder %s26, 0
      %p89 = por %p87, %p88
      %p90 = scmp.ne.s32.totalorder %s78, %s79
      %p91 = scmp.eq.s32.totalorder %s27, 1
      %p92 = por %p90, %p91
      %p94 = scmp.ne.s32.totalorder %s79, %s93
      %p95 = scmp.eq.s32.totalorder %s27, 0
      %p96 = por %p94, %p95
      %s97 = ssub.s32 %s21, %s28
      %p98 = scmp.eq.s32.totalorder %s97, 0
      %s100 = sadd.s32 %s99, 1
      %s101 = scalar_select %p98, %s99, %s100
      %p104 = pneg %p98
      %p105 = scmp.eq.s32.totalorder %s21, 1
      %p106 = por %p104, %p105
      %p107 = scmp.ne.s32.totalorder %s99, %s102
      %p108 = scmp.eq.s32.totalorder %s21, 0
      %p109 = por %p107, %p108
      %p110 = scmp.ne.s32.totalorder %s99, %s102
      %p111 = scmp.eq.s32.totalorder %s26, 1
      %p112 = por %p110, %p111
      %p113 = scmp.ne.s32.totalorder %s102, %s103
      %p114 = scmp.eq.s32.totalorder %s26, 0
      %p115 = por %p113, %p114
      %p116 = scmp.ne.s32.totalorder %s102, %s103
      %p117 = scmp.eq.s32.totalorder %s27, 1
      %p118 = por %p116, %p117
      %p120 = scmp.ne.s32.totalorder %s103, %s119
      %p121 = scmp.eq.s32.totalorder %s27, 0
      %p122 = por %p120, %p121
      %s123 = ssub.s32 %s21, %s28
      %p124 = scmp.eq.s32.totalorder %s123, 0
      %s126 = sadd.s32 %s125, 1
      %s127 = scalar_select %p124, %s125, %s126
      %p130 = pneg %p124
      %p131 = scmp.eq.s32.totalorder %s21, 1
      %p132 = por %p130, %p131
      %p133 = scmp.ne.s32.totalorder %s125, %s128
      %p134 = scmp.eq.s32.totalorder %s21, 0
      %p135 = por %p133, %p134
      %p136 = scmp.ne.s32.totalorder %s125, %s128
      %p137 = scmp.eq.s32.totalorder %s26, 1
      %p138 = por %p136, %p137
      %p139 = scmp.ne.s32.totalorder %s128, %s129
      %p140 = scmp.eq.s32.totalorder %s26, 0
      %p141 = por %p139, %p140
      %p142 = scmp.ne.s32.totalorder %s128, %s129
      %p143 = scmp.eq.s32.totalorder %s27, 1
      %p144 = por %p142, %p143
      %p146 = scmp.ne.s32.totalorder %s129, %s145
      %p147 = scmp.eq.s32.totalorder %s27, 0
      %p148 = por %p146, %p147
      %p149 = scmp.le.s32.totalorder 1, %s21
      %p150 = scmp.lt.s32.totalorder %s21, 3
      %p151 = pnand %p149, %p150
      %p152 = pneg %p151
      // Predicated region
      $region9: #{tpu_custom_call.1} parent=5 // pred_check
        _
      $region10: #{tpu_custom_call.1} parent=5 // pred_check_branch
        %154 = sbr.rel (%p151) target = $region12
      $region11: #{tpu_custom_call.1} parent=5 // pred_region
        %s155 = ssub.s32 %s21, 1
        // Predicated region
        $region13: #{tpu_custom_call.1} parent=11 // pred_check
          %p156 = pneg %p68
        $region14: #{tpu_custom_call.1} parent=11 // pred_check_branch
          %158 = sbr.rel (%p156) target = $region16
        $region15: #{tpu_custom_call.1} parent=11 // pred_region
          %s160 = ssub.s32 1024, 1024
          %161 = vsyncadd [#allocation6], %s160
          %s162 = sshll.u32 [#allocation5], 4
          %s163 = int_to_ptr.vmem [resolvable:$true] %s162
          %168 = dma.hbm_to_vmem [thread:$0]  %s1, 1024, %s163, [#allocation6], 64, 64, 4
        $region16: #{tpu_custom_call.1} parent=11 // pred_fallthru
          _
        // Predicated region
        $region17: #{tpu_custom_call.1} parent=11 // pred_check
          %p169 = pneg %p89
        $region18: #{tpu_custom_call.1} parent=11 // pred_check_branch
          %171 = sbr.rel (%p169) target = $region20
        $region19: #{tpu_custom_call.1} parent=11 // pred_region
          _
        $region20: #{tpu_custom_call.1} parent=11 // pred_fallthru
          _
      $region12: #{tpu_custom_call.1} parent=5 // pred_fallthru
        _
      %p172 = scmp.lt.s32.totalorder %s21, 2
      // Predicated region
      $region21: #{tpu_custom_call.1} parent=5 // pred_check
        %p173 = pneg %p172
      $region22: #{tpu_custom_call.1} parent=5 // pred_check_branch
        %175 = sbr.rel (%p173) target = $region24
      $region23: #{tpu_custom_call.1} parent=5 // pred_region
        // Predicated region
        $region25: #{tpu_custom_call.1} parent=23 // pred_check
          %p176 = pneg %p41
        $region26: #{tpu_custom_call.1} parent=23 // pred_check_branch
          %178 = sbr.rel (%p176) target = $region28
        $region27: #{tpu_custom_call.1} parent=23 // pred_region
          %s179 = sand.u32 %s31, 1
          %s180 = scalar_lea.sflag [#allocation3], %s179
          %s181 = sand.u32 %s31, 1
          %s182 = smul.addr %s181, 128
          %s183 = scalar_lea.vmem [#allocation2], %s182
          %s184 = smul.u32 32, %s21
          %s186 = ssub.s32 2048, 2048
          %187 = vsyncadd %s180, %s186
          %s188 = smul.addr %s184, 64
          %s189 = scalar_lea.hbm %s0, %s188
          %s190 = sshll.u32 %s183, 4
          %s191 = int_to_ptr.vmem [resolvable:$true] %s190
          %196 = dma.hbm_to_vmem [thread:$0]  %s189, 2048, %s191, %s180, 64, 64, 4
        $region28: #{tpu_custom_call.1} parent=23 // pred_fallthru
          _
      $region24: #{tpu_custom_call.1} parent=5 // pred_fallthru
        _
      %p197 = scmp.le.s32.totalorder 1, %s21
      %p198 = scmp.lt.s32.totalorder %s21, 3
      %p199 = pnand %p197, %p198
      %p200 = pneg %p199
      // Predicated region
      $region29: #{tpu_custom_call.1} parent=5 // pred_check
        _
      $region30: #{tpu_custom_call.1} parent=5 // pred_check_branch
        %202 = sbr.rel (%p199) target = $region32
      $region31: #{tpu_custom_call.1} parent=5 // pred_region
        %s203 = ssub.s32 %s21, 1
        %s204 = sand.u32 %s34, 1
        %s205 = scalar_lea.sflag [#allocation3], %s204
        %s206 = sand.u32 %s34, 1
        %s207 = smul.addr %s206, 128
        %s208 = scalar_lea.vmem [#allocation2], %s207
        // Predicated region
        $region33: #{tpu_custom_call.1} parent=31 // pred_check
          %p209 = pneg %p47
        $region34: #{tpu_custom_call.1} parent=31 // pred_check_branch
          %211 = sbr.rel (%p209) target = $region36
        $region35: #{tpu_custom_call.1} parent=31 // pred_region
          %212 = dma.done %s205, 2048
        $region36: #{tpu_custom_call.1} parent=31 // pred_fallthru
          _
        // Predicated region
        $region37: #{tpu_custom_call.1} parent=31 // pred_check
          %p213 = pneg %p68
        $region38: #{tpu_custom_call.1} parent=31 // pred_check_branch
          %215 = sbr.rel (%p213) target = $region40
        $region39: #{tpu_custom_call.1} parent=31 // pred_region
          %216 = dma.done [#allocation6], 1024
        $region40: #{tpu_custom_call.1} parent=31 // pred_fallthru
          _
        %s217 = sand.u32 %s34, 1
        %s218 = scalar_lea.sflag [#allocation3], %s217
        %s219 = sand.u32 %s34, 1
        %s220 = smul.addr %s219, 128
        %s221 = scalar_lea.vmem [#allocation2], %s220
        %p222 = pneg %p47
        %p223 = pneg %p44
        %p224 = pneg %p68
        %p225 = pneg %p65
        %p226 = pneg %p89
        %p227 = pneg %p86
        %p228 = pneg %p115
        %p229 = pneg %p112
        %s230 = sand.u32 %s102, 1
        %s231 = scalar_lea.sflag [#allocation4], %s230
        %s232 = sand.u32 %s102, 1
        %s233 = smul.addr %s232, 256
        %s234 = scalar_lea.vmem [#allocation7], %s233
        %p235 = pneg %p141
        %p236 = pneg %p138
        %s237 = sand.u32 %s128, 1
        %s238 = scalar_lea.sflag [#allocation9], %s237
        %s239 = sand.u32 %s128, 1
        %s240 = smul.addr %s239, 128
        %s241 = scalar_lea.vmem [#allocation8], %s240
        %s242 = smul.u32 32, %s26
        %s243 = smul.u32 32, %s26
        %s244 = smul.u32 32, %s26
        %v246 = vld [vmem:[%s208] sm:$0xf]
        %v247 = vld [vmem:[%s208 + $0x4] sm:$0xf]
        %v248 = vld [vmem:[%s208 + $0x8] sm:$0xf]
        %v249 = vld [vmem:[%s208 + $0xc] sm:$0xf]
        %v250 = vld [vmem:[%s208 + $0x10] sm:$0xf]
        %v251 = vld [vmem:[%s208 + $0x14] sm:$0xf]
        %v252 = vld [vmem:[%s208 + $0x18] sm:$0xf]
        %v253 = vld [vmem:[%s208 + $0x1c] sm:$0xf]
        %v254 = vld [vmem:[%s208 + $0x20] sm:$0xf]
        %v255 = vld [vmem:[%s208 + $0x24] sm:$0xf]
        %v256 = vld [vmem:[%s208 + $0x28] sm:$0xf]
        %v257 = vld [vmem:[%s208 + $0x2c] sm:$0xf]
        %v258 = vld [vmem:[%s208 + $0x30] sm:$0xf]
        %v259 = vld [vmem:[%s208 + $0x34] sm:$0xf]
        %v260 = vld [vmem:[%s208 + $0x38] sm:$0xf]
        %v261 = vld [vmem:[%s208 + $0x3c] sm:$0xf]
        %v262 = vld [vmem:[%s208 + $0x40] sm:$0xf]
        %v263 = vld [vmem:[%s208 + $0x44] sm:$0xf]
        %v264 = vld [vmem:[%s208 + $0x48] sm:$0xf]
        %v265 = vld [vmem:[%s208 + $0x4c] sm:$0xf]
        %v266 = vld [vmem:[%s208 + $0x50] sm:$0xf]
        %v267 = vld [vmem:[%s208 + $0x54] sm:$0xf]
        %v268 = vld [vmem:[%s208 + $0x58] sm:$0xf]
        %v269 = vld [vmem:[%s208 + $0x5c] sm:$0xf]
        %v270 = vld [vmem:[%s208 + $0x60] sm:$0xf]
        %v271 = vld [vmem:[%s208 + $0x64] sm:$0xf]
        %v272 = vld [vmem:[%s208 + $0x68] sm:$0xf]
        %v273 = vld [vmem:[%s208 + $0x6c] sm:$0xf]
        %v274 = vld [vmem:[%s208 + $0x70] sm:$0xf]
        %v275 = vld [vmem:[%s208 + $0x74] sm:$0xf]
        %v276 = vld [vmem:[%s208 + $0x78] sm:$0xf]
        %v277 = vld [vmem:[%s208 + $0x7c] sm:$0xf]
        %v278 = vld [vmem:[#allocation5] sm:$0xf]
        %v279 = vld [vmem:[#allocation5 + $0x4] sm:$0xf]
        %v280 = vld [vmem:[#allocation5 + $0x8] sm:$0xf]
        %v281 = vld [vmem:[#allocation5 + $0xc] sm:$0xf]
        %v282 = vld [vmem:[#allocation5 + $0x10] sm:$0xf]
        %v283 = vld [vmem:[#allocation5 + $0x14] sm:$0xf]
        %v284 = vld [vmem:[#allocation5 + $0x18] sm:$0xf]
        %v285 = vld [vmem:[#allocation5 + $0x1c] sm:$0xf]
        %v286 = vld [vmem:[#allocation5 + $0x20] sm:$0xf]
        %v287 = vld [vmem:[#allocation5 + $0x24] sm:$0xf]
        %v288 = vld [vmem:[#allocation5 + $0x28] sm:$0xf]
        %v289 = vld [vmem:[#allocation5 + $0x2c] sm:$0xf]
        %v290 = vld [vmem:[#allocation5 + $0x30] sm:$0xf]
        %v291 = vld [vmem:[#allocation5 + $0x34] sm:$0xf]
        %v292 = vld [vmem:[#allocation5 + $0x38] sm:$0xf]
        %v293 = vld [vmem:[#allocation5 + $0x3c] sm:$0xf]
        %v294 = vld [vmem:[%s2] sm:$0x1]
        %v296 = vlaneseq
        %v297 = vshrl.u32 %v296, 7
        %v298 = vsub.s32 0, %v297
        %v299 = vrot.slane %v294, %v298
        %v333 = vunpack.c.l.b16 %v246
        %v334 = vunpack.c.l.b16 %v247
        %v335 = vunpack.c.l.b16 %v248
        %v336 = vunpack.c.l.b16 %v249
        %v337 = vunpack.c.l.b16 %v250
        %v338 = vunpack.c.l.b16 %v251
        %v339 = vunpack.c.l.b16 %v252
        %v340 = vunpack.c.l.b16 %v253
        %v341 = vunpack.c.l.b16 %v254
        %v342 = vunpack.c.l.b16 %v255
        %v343 = vunpack.c.l.b16 %v256
        %v344 = vunpack.c.l.b16 %v257
        %v345 = vunpack.c.l.b16 %v258
        %v346 = vunpack.c.l.b16 %v259
        %v347 = vunpack.c.l.b16 %v260
        %v348 = vunpack.c.l.b16 %v261
        %v349 = vunpack.c.l.b16 %v262
        %v350 = vunpack.c.l.b16 %v263
        %v351 = vunpack.c.l.b16 %v264
        %v352 = vunpack.c.l.b16 %v265
        %v353 = vunpack.c.l.b16 %v266
        %v354 = vunpack.c.l.b16 %v267
        %v355 = vunpack.c.l.b16 %v268
        %v356 = vunpack.c.l.b16 %v269
        %v357 = vunpack.c.l.b16 %v270
        %v358 = vunpack.c.l.b16 %v271
        %v359 = vunpack.c.l.b16 %v272
        %v360 = vunpack.c.l.b16 %v273
        %v361 = vunpack.c.l.b16 %v274
        %v362 = vunpack.c.l.b16 %v275
        %v363 = vunpack.c.l.b16 %v276
        %v364 = vunpack.c.l.b16 %v277
        %v365 = vpack.c.b16 %v334, %v333
        %v366 = vpack.c.b16 %v336, %v335
        %v367 = vpack.c.b16 %v338, %v337
        %v368 = vpack.c.b16 %v340, %v339
        %v369 = vpack.c.b16 %v342, %v341
        %v370 = vpack.c.b16 %v344, %v343
        %v371 = vpack.c.b16 %v346, %v345
        %v372 = vpack.c.b16 %v348, %v347
        %v373 = vpack.c.b16 %v350, %v349
        %v374 = vpack.c.b16 %v352, %v351
        %v375 = vpack.c.b16 %v354, %v353
        %v376 = vpack.c.b16 %v356, %v355
        %v377 = vpack.c.b16 %v358, %v357
        %v378 = vpack.c.b16 %v360, %v359
        %v379 = vpack.c.b16 %v362, %v361
        %v380 = vpack.c.b16 %v364, %v363
        %v413 = vunpack.c.l.b16 %v278
        %v414 = vunpack.c.l.b16 %v279
        %v415 = vunpack.c.l.b16 %v280
        %v416 = vunpack.c.l.b16 %v281
        %v417 = vunpack.c.l.b16 %v282
        %v418 = vunpack.c.l.b16 %v283
        %v419 = vunpack.c.l.b16 %v284
        %v420 = vunpack.c.l.b16 %v285
        %v421 = vunpack.c.l.b16 %v286
        %v422 = vunpack.c.l.b16 %v287
        %v423 = vunpack.c.l.b16 %v288
        %v424 = vunpack.c.l.b16 %v289
        %v425 = vunpack.c.l.b16 %v290
        %v426 = vunpack.c.l.b16 %v291
        %v427 = vunpack.c.l.b16 %v292
        %v428 = vunpack.c.l.b16 %v293
        %v429 = vpack.c.b16 %v414, %v413
        %v430 = vpack.c.b16 %v416, %v415
        %v431 = vpack.c.b16 %v418, %v417
        %v432 = vpack.c.b16 %v420, %v419
        %v433 = vpack.c.b16 %v422, %v421
        %v434 = vpack.c.b16 %v424, %v423
        %v435 = vpack.c.b16 %v426, %v425
        %v436 = vpack.c.b16 %v428, %v427
        %445 = vmatprep.subr.bf16.mxu0 0
        %446 = vmatpush1.bf16.msra.mxu0 %v429
        %447 = vmatprep.subr.bf16.mxu0 0
        %448 = vmatpush1.bf16.msra.mxu0 %v430
        %449 = vmatprep.subr.bf16.mxu0 0
        %450 = vmatpush1.bf16.msra.mxu0 %v431
        %451 = vmatprep.subr.bf16.mxu0 0
        %452 = vmatpush1.bf16.msra.mxu0 %v432
        %453 = vmatprep.subr.bf16.mxu0 0
        %454 = vmatpush1.bf16.msra.mxu0 %v433
        %455 = vmatprep.subr.bf16.mxu0 0
        %456 = vmatpush1.bf16.msra.mxu0 %v434
        %457 = vmatprep.subr.bf16.mxu0 0
        %458 = vmatpush1.bf16.msra.mxu0 %v435
        %459 = vmatprep.subr.bf16.mxu0 0
        %460 = vmatpush1.bf16.msra.mxu0 %v436
        %461 = vmatprep.subr.bf16.mxu0 0
        %462 = vmatpush1.bf16.msra.mxu0 0
        %463 = vmatprep.subr.bf16.mxu0 0
        %464 = vmatpush1.bf16.msra.mxu0 0
        %465 = vmatprep.subr.bf16.mxu0 0
        %466 = vmatpush1.bf16.msra.mxu0 0
        %467 = vmatprep.subr.bf16.mxu0 0
        %468 = vmatpush1.bf16.msra.mxu0 0
        %469 = vmatprep.subr.bf16.mxu0 0
        %470 = vmatpush1.bf16.msra.mxu0 0
        %471 = vmatprep.subr.bf16.mxu0 0
        %472 = vmatpush1.bf16.msra.mxu0 0
        %473 = vmatprep.subr.bf16.mxu0 0
        %474 = vmatpush1.bf16.msra.mxu0 0
        %475 = vmatprep.subr.bf16.mxu0 0
        %476 = vmatpush1.bf16.msra.mxu0 0
        %477 = vmatprep.mubr.bf16.mxu0 0
        %478 = vmatmul.mubr.bf16.gmra.mrb[0].mxu0 %v365
        %v479 = vpop.f32.mrb[0].mxu0
        %v480 = vadd.f32 %v299, %v479
        %v481 = vpop.f32.mrb[0].mxu0
        %v482 = vpop.f32.mrb[0].mxu0
        %v483 = vadd.f32 %v299, %v482
        %v484 = vpop.f32.mrb[0].mxu0
        %485 = vmatprep.mubr.bf16.mxu0 0
        %486 = vmatmul.mubr.bf16.gmra.mrb[0].mxu0 %v366
        %v487 = vpop.f32.mrb[0].mxu0
        %v488 = vadd.f32 %v299, %v487
        %v489 = vpop.f32.mrb[0].mxu0
        %v490 = vpop.f32.mrb[0].mxu0
        %v491 = vadd.f32 %v299, %v490
        %v492 = vpop.f32.mrb[0].mxu0
        %493 = vmatprep.mubr.bf16.mxu0 0
        %494 = vmatmul.mubr.bf16.gmra.mrb[0].mxu0 %v367
        %v495 = vpop.f32.mrb[0].mxu0
        %v496 = vadd.f32 %v299, %v495
        %v497 = vpop.f32.mrb[0].mxu0
        %v498 = vpop.f32.mrb[0].mxu0
        %v499 = vadd.f32 %v299, %v498
        %v500 = vpop.f32.mrb[0].mxu0
        %501 = vmatprep.mubr.bf16.mxu0 0
        %502 = vmatmul.mubr.bf16.gmra.mrb[0].mxu0 %v368
        %v503 = vpop.f32.mrb[0].mxu0
        %v504 = vadd.f32 %v299, %v503
        %v505 = vpop.f32.mrb[0].mxu0
        %v506 = vpop.f32.mrb[0].mxu0
        %v507 = vadd.f32 %v299, %v506
        %v508 = vpop.f32.mrb[0].mxu0
        %509 = vmatprep.mubr.bf16.mxu0 0
        %510 = vmatmul.mubr.bf16.gmra.mrb[0].mxu0 %v369
        %v511 = vpop.f32.mrb[0].mxu0
        %v512 = vadd.f32 %v299, %v511
        %v513 = vpop.f32.mrb[0].mxu0
        %v514 = vpop.f32.mrb[0].mxu0
        %v515 = vadd.f32 %v299, %v514
        %v516 = vpop.f32.mrb[0].mxu0
        %517 = vmatprep.mubr.bf16.mxu0 0
        %518 = vmatmul.mubr.bf16.gmra.mrb[0].mxu0 %v370
        %v519 = vpop.f32.mrb[0].mxu0
        %v520 = vadd.f32 %v299, %v519
        %v521 = vpop.f32.mrb[0].mxu0
        %v522 = vpop.f32.mrb[0].mxu0
        %v523 = vadd.f32 %v299, %v522
        %v524 = vpop.f32.mrb[0].mxu0
        %525 = vmatprep.mubr.bf16.mxu0 0
        %526 = vmatmul.mubr.bf16.gmra.mrb[0].mxu0 %v371
        %v527 = vpop.f32.mrb[0].mxu0
        %v528 = vadd.f32 %v299, %v527
        %v529 = vpop.f32.mrb[0].mxu0
        %v530 = vpop.f32.mrb[0].mxu0
        %v531 = vadd.f32 %v299, %v530
        %v532 = vpop.f32.mrb[0].mxu0
        %533 = vmatprep.mubr.bf16.mxu0 0
        %534 = vmatmul.mubr.bf16.gmra.mrb[0].mxu0 %v372
        %v535 = vpop.f32.mrb[0].mxu0
        %v536 = vadd.f32 %v299, %v535
        %v537 = vpop.f32.mrb[0].mxu0
        %v538 = vpop.f32.mrb[0].mxu0
        %v539 = vadd.f32 %v299, %v538
        %v540 = vpop.f32.mrb[0].mxu0
        %541 = vmatprep.mubr.bf16.mxu0 0
        %542 = vmatmul.mubr.bf16.gmra.mrb[0].mxu0 %v373
        %v543 = vpop.f32.mrb[0].mxu0
        %v544 = vadd.f32 %v299, %v543
        %v545 = vpop.f32.mrb[0].mxu0
        %v546 = vpop.f32.mrb[0].mxu0
        %v547 = vadd.f32 %v299, %v546
        %v548 = vpop.f32.mrb[0].mxu0
        %549 = vmatprep.mubr.bf16.mxu0 0
        %550 = vmatmul.mubr.bf16.gmra.mrb[0].mxu0 %v374
        %v551 = vpop.f32.mrb[0].mxu0
        %v552 = vadd.f32 %v299, %v551
        %v553 = vpop.f32.mrb[0].mxu0
        %v554 = vpop.f32.mrb[0].mxu0
        %v555 = vadd.f32 %v299, %v554
        %v556 = vpop.f32.mrb[0].mxu0
        %557 = vmatprep.mubr.bf16.mxu0 0
        %558 = vmatmul.mubr.bf16.gmra.mrb[0].mxu0 %v375
        %v559 = vpop.f32.mrb[0].mxu0
        %v560 = vadd.f32 %v299, %v559
        %v561 = vpop.f32.mrb[0].mxu0
        %v562 = vpop.f32.mrb[0].mxu0
        %v563 = vadd.f32 %v299, %v562
        %v564 = vpop.f32.mrb[0].mxu0
        %565 = vmatprep.mubr.bf16.mxu0 0
        %566 = vmatmul.mubr.bf16.gmra.mrb[0].mxu0 %v376
        %v567 = vpop.f32.mrb[0].mxu0
        %v568 = vadd.f32 %v299, %v567
        %v569 = vpop.f32.mrb[0].mxu0
        %v570 = vpop.f32.mrb[0].mxu0
        %v571 = vadd.f32 %v299, %v570
        %v572 = vpop.f32.mrb[0].mxu0
        %573 = vmatprep.mubr.bf16.mxu0 0
        %574 = vmatmul.mubr.bf16.gmra.mrb[0].mxu0 %v377
        %v575 = vpop.f32.mrb[0].mxu0
        %v576 = vadd.f32 %v299, %v575
        %v577 = vpop.f32.mrb[0].mxu0
        %v578 = vpop.f32.mrb[0].mxu0
        %v579 = vadd.f32 %v299, %v578
        %v580 = vpop.f32.mrb[0].mxu0
        %581 = vmatprep.mubr.bf16.mxu0 0
        %582 = vmatmul.mubr.bf16.gmra.mrb[0].mxu0 %v378
        %v583 = vpop.f32.mrb[0].mxu0
        %v584 = vadd.f32 %v299, %v583
        %v585 = vpop.f32.mrb[0].mxu0
        %v586 = vpop.f32.mrb[0].mxu0
        %v587 = vadd.f32 %v299, %v586
        %v588 = vpop.f32.mrb[0].mxu0
        %589 = vmatprep.mubr.bf16.mxu0 0
        %590 = vmatmul.mubr.bf16.gmra.mrb[0].mxu0 %v379
        %v591 = vpop.f32.mrb[0].mxu0
        %v592 = vadd.f32 %v299, %v591
        %v593 = vpop.f32.mrb[0].mxu0
        %v594 = vpop.f32.mrb[0].mxu0
        %v595 = vadd.f32 %v299, %v594
        %v596 = vpop.f32.mrb[0].mxu0
        %597 = vmatprep.mubr.bf16.mxu0 0
        %598 = vmatmul.mubr.bf16.gmra.mrb[0].mxu0 %v380
        %v599 = vpop.f32.mrb[0].mxu0
        %v600 = vadd.f32 %v299, %v599
        %v601 = vpop.f32.mrb[0].mxu0
        %v602 = vpop.f32.mrb[0].mxu0
        %v603 = vadd.f32 %v299, %v602
        %v604 = vpop.f32.mrb[0].mxu0
        %605 = vdwg.mxu0
        %v606 = vmax.f32 %v480, 0.0
        %v607 = vmax.f32 %v483, 0.0
        %v608 = vmax.f32 %v488, 0.0
        %v609 = vmax.f32 %v491, 0.0
        %v610 = vmax.f32 %v496, 0.0
        %v611 = vmax.f32 %v499, 0.0
        %v612 = vmax.f32 %v504, 0.0
        %v613 = vmax.f32 %v507, 0.0
        %v614 = vmax.f32 %v512, 0.0
        %v615 = vmax.f32 %v515, 0.0
        %v616 = vmax.f32 %v520, 0.0
        %v617 = vmax.f32 %v523, 0.0
        %v618 = vmax.f32 %v528, 0.0
        %v619 = vmax.f32 %v531, 0.0
        %v620 = vmax.f32 %v536, 0.0
        %v621 = vmax.f32 %v539, 0.0
        %v622 = vmax.f32 %v544, 0.0
        %v623 = vmax.f32 %v547, 0.0
        %v624 = vmax.f32 %v552, 0.0
        %v625 = vmax.f32 %v555, 0.0
        %v626 = vmax.f32 %v560, 0.0
        %v627 = vmax.f32 %v563, 0.0
        %v628 = vmax.f32 %v568, 0.0
        %v629 = vmax.f32 %v571, 0.0
        %v630 = vmax.f32 %v576, 0.0
        %v631 = vmax.f32 %v579, 0.0
        %v632 = vmax.f32 %v584, 0.0
        %v633 = vmax.f32 %v587, 0.0
        %v634 = vmax.f32 %v592, 0.0
        %v635 = vmax.f32 %v595, 0.0
        %v636 = vmax.f32 %v600, 0.0
        %v637 = vmax.f32 %v603, 0.0
        %v638 = vmul.f32 %v606, %v606
        %v639 = vmul.f32 %v607, %v607
        %v640 = vmul.f32 %v608, %v608
        %v641 = vmul.f32 %v609, %v609
        %v642 = vmul.f32 %v610, %v610
        %v643 = vmul.f32 %v611, %v611
        %v644 = vmul.f32 %v612, %v612
        %v645 = vmul.f32 %v613, %v613
        %v646 = vmul.f32 %v614, %v614
        %v647 = vmul.f32 %v615, %v615
        %v648 = vmul.f32 %v616, %v616
        %v649 = vmul.f32 %v617, %v617
        %v650 = vmul.f32 %v618, %v618
        %v651 = vmul.f32 %v619, %v619
        %v652 = vmul.f32 %v620, %v620
        %v653 = vmul.f32 %v621, %v621
        %v654 = vmul.f32 %v622, %v622
        %v655 = vmul.f32 %v623, %v623
        %v656 = vmul.f32 %v624, %v624
        %v657 = vmul.f32 %v625, %v625
        %v658 = vmul.f32 %v626, %v626
        %v659 = vmul.f32 %v627, %v627
        %v660 = vmul.f32 %v628, %v628
        %v661 = vmul.f32 %v629, %v629
        %v662 = vmul.f32 %v630, %v630
        %v663 = vmul.f32 %v631, %v631
        %v664 = vmul.f32 %v632, %v632
        %v665 = vmul.f32 %v633, %v633
        %v666 = vmul.f32 %v634, %v634
        %v667 = vmul.f32 %v635, %v635
        %v668 = vmul.f32 %v636, %v636
        %v669 = vmul.f32 %v637, %v637
        %670 = vadd.xlane.f32.xlu0 %v638
        %v671 = vpop.xlane.xlu0 %670
        %672 = vadd.xlane.f32.xlu0 %v639
        %v673 = vpop.xlane.xlu0 %672
        %674 = vadd.xlane.f32.xlu0 %v640
        %v675 = vpop.xlane.xlu0 %674
        %676 = vadd.xlane.f32.xlu0 %v641
        %v677 = vpop.xlane.xlu0 %676
        %678 = vadd.xlane.f32.xlu0 %v642
        %v679 = vpop.xlane.xlu0 %678
        %680 = vadd.xlane.f32.xlu0 %v643
        %v681 = vpop.xlane.xlu0 %680
        %682 = vadd.xlane.f32.xlu0 %v644
        %v683 = vpop.xlane.xlu0 %682
        %684 = vadd.xlane.f32.xlu0 %v645
        %v685 = vpop.xlane.xlu0 %684
        %686 = vadd.xlane.f32.xlu0 %v646
        %v687 = vpop.xlane.xlu0 %686
        %688 = vadd.xlane.f32.xlu0 %v647
        %v689 = vpop.xlane.xlu0 %688
        %690 = vadd.xlane.f32.xlu0 %v648
        %v691 = vpop.xlane.xlu0 %690
        %692 = vadd.xlane.f32.xlu0 %v649
        %v693 = vpop.xlane.xlu0 %692
        %694 = vadd.xlane.f32.xlu0 %v650
        %v695 = vpop.xlane.xlu0 %694
        %696 = vadd.xlane.f32.xlu0 %v651
        %v697 = vpop.xlane.xlu0 %696
        %698 = vadd.xlane.f32.xlu0 %v652
        %v699 = vpop.xlane.xlu0 %698
        %700 = vadd.xlane.f32.xlu0 %v653
        %v701 = vpop.xlane.xlu0 %700
        %702 = vadd.xlane.f32.xlu0 %v654
        %v703 = vpop.xlane.xlu0 %702
        %704 = vadd.xlane.f32.xlu0 %v655
        %v705 = vpop.xlane.xlu0 %704
        %706 = vadd.xlane.f32.xlu0 %v656
        %v707 = vpop.xlane.xlu0 %706
        %708 = vadd.xlane.f32.xlu0 %v657
        %v709 = vpop.xlane.xlu0 %708
        %710 = vadd.xlane.f32.xlu0 %v658
        %v711 = vpop.xlane.xlu0 %710
        %712 = vadd.xlane.f32.xlu0 %v659
        %v713 = vpop.xlane.xlu0 %712
        %714 = vadd.xlane.f32.xlu0 %v660
        %v715 = vpop.xlane.xlu0 %714
        %716 = vadd.xlane.f32.xlu0 %v661
        %v717 = vpop.xlane.xlu0 %716
        %718 = vadd.xlane.f32.xlu0 %v662
        %v719 = vpop.xlane.xlu0 %718
        %720 = vadd.xlane.f32.xlu0 %v663
        %v721 = vpop.xlane.xlu0 %720
        %722 = vadd.xlane.f32.xlu0 %v664
        %v723 = vpop.xlane.xlu0 %722
        %724 = vadd.xlane.f32.xlu0 %v665
        %v725 = vpop.xlane.xlu0 %724
        %726 = vadd.xlane.f32.xlu0 %v666
        %v727 = vpop.xlane.xlu0 %726
        %728 = vadd.xlane.f32.xlu0 %v667
        %v729 = vpop.xlane.xlu0 %728
        %730 = vadd.xlane.f32.xlu0 %v668
        %v731 = vpop.xlane.xlu0 %730
        %732 = vadd.xlane.f32.xlu0 %v669
        %v733 = vpop.xlane.xlu0 %732
        %v734 = vmax.f32 %v671, 1e-24
        %v735 = vmax.f32 %v673, 1e-24
        %v736 = vmax.f32 %v675, 1e-24
        %v737 = vmax.f32 %v677, 1e-24
        %v738 = vmax.f32 %v679, 1e-24
        %v739 = vmax.f32 %v681, 1e-24
        %v740 = vmax.f32 %v683, 1e-24
        %v741 = vmax.f32 %v685, 1e-24
        %v742 = vmax.f32 %v687, 1e-24
        %v743 = vmax.f32 %v689, 1e-24
        %v744 = vmax.f32 %v691, 1e-24
        %v745 = vmax.f32 %v693, 1e-24
        %v746 = vmax.f32 %v695, 1e-24
        %v747 = vmax.f32 %v697, 1e-24
        %v748 = vmax.f32 %v699, 1e-24
        %v749 = vmax.f32 %v701, 1e-24
        %v750 = vmax.f32 %v703, 1e-24
        %v751 = vmax.f32 %v705, 1e-24
        %v752 = vmax.f32 %v707, 1e-24
        %v753 = vmax.f32 %v709, 1e-24
        %v754 = vmax.f32 %v711, 1e-24
        %v755 = vmax.f32 %v713, 1e-24
        %v756 = vmax.f32 %v715, 1e-24
        %v757 = vmax.f32 %v717, 1e-24
        %v758 = vmax.f32 %v719, 1e-24
        %v759 = vmax.f32 %v721, 1e-24
        %v760 = vmax.f32 %v723, 1e-24
        %v761 = vmax.f32 %v725, 1e-24
        %v762 = vmax.f32 %v727, 1e-24
        %v763 = vmax.f32 %v729, 1e-24
        %v764 = vmax.f32 %v731, 1e-24
        %v765 = vmax.f32 %v733, 1e-24
        %v766 = vrsqrt.pop %v734
        %v767 = vrsqrt.pop %v735
        %v768 = vrsqrt.pop %v736
        %v769 = vrsqrt.pop %v737
        %v770 = vrsqrt.pop %v738
        %v771 = vrsqrt.pop %v739
        %v772 = vrsqrt.pop %v740
        %v773 = vrsqrt.pop %v741
        %v774 = vrsqrt.pop %v742
        %v775 = vrsqrt.pop %v743
        %v776 = vrsqrt.pop %v744
        %v777 = vrsqrt.pop %v745
        %v778 = vrsqrt.pop %v746
        %v779 = vrsqrt.pop %v747
        %v780 = vrsqrt.pop %v748
        %v781 = vrsqrt.pop %v749
        %v782 = vrsqrt.pop %v750
        %v783 = vrsqrt.pop %v751
        %v784 = vrsqrt.pop %v752
        %v785 = vrsqrt.pop %v753
        %v786 = vrsqrt.pop %v754
        %v787 = vrsqrt.pop %v755
        %v788 = vrsqrt.pop %v756
        %v789 = vrsqrt.pop %v757
        %v790 = vrsqrt.pop %v758
        %v791 = vrsqrt.pop %v759
        %v792 = vrsqrt.pop %v760
        %v793 = vrsqrt.pop %v761
        %v794 = vrsqrt.pop %v762
        %v795 = vrsqrt.pop %v763
        %v796 = vrsqrt.pop %v764
        %v797 = vrsqrt.pop %v765
        %v798 = vmul.f32 %v606, %v766
        %v799 = vmul.f32 %v607, %v767
        %v800 = vmul.f32 %v608, %v768
        %v801 = vmul.f32 %v609, %v769
        %v802 = vmul.f32 %v610, %v770
        %v803 = vmul.f32 %v611, %v771
        %v804 = vmul.f32 %v612, %v772
        %v805 = vmul.f32 %v613, %v773
        %v806 = vmul.f32 %v614, %v774
        %v807 = vmul.f32 %v615, %v775
        %v808 = vmul.f32 %v616, %v776
        %v809 = vmul.f32 %v617, %v777
        %v810 = vmul.f32 %v618, %v778
        %v811 = vmul.f32 %v619, %v779
        %v812 = vmul.f32 %v620, %v780
        %v813 = vmul.f32 %v621, %v781
        %v814 = vmul.f32 %v622, %v782
        %v815 = vmul.f32 %v623, %v783
        %v816 = vmul.f32 %v624, %v784
        %v817 = vmul.f32 %v625, %v785
        %v818 = vmul.f32 %v626, %v786
        %v819 = vmul.f32 %v627, %v787
        %v820 = vmul.f32 %v628, %v788
        %v821 = vmul.f32 %v629, %v789
        %v822 = vmul.f32 %v630, %v790
        %v823 = vmul.f32 %v631, %v791
        %v824 = vmul.f32 %v632, %v792
        %v825 = vmul.f32 %v633, %v793
        %v826 = vmul.f32 %v634, %v794
        %v827 = vmul.f32 %v635, %v795
        %v828 = vmul.f32 %v636, %v796
        %v829 = vmul.f32 %v637, %v797
        %830 = vst [vmem:[%s234] sm:$0xff] %v798
        %831 = vst [vmem:[%s234 + $0x8] sm:$0xff] %v799
        %832 = vst [vmem:[%s234 + $0x10] sm:$0xff] %v800
        %833 = vst [vmem:[%s234 + $0x18] sm:$0xff] %v801
        %834 = vst [vmem:[%s234 + $0x20] sm:$0xff] %v802
        %835 = vst [vmem:[%s234 + $0x28] sm:$0xff] %v803
        %836 = vst [vmem:[%s234 + $0x30] sm:$0xff] %v804
        %837 = vst [vmem:[%s234 + $0x38] sm:$0xff] %v805
        %838 = vst [vmem:[%s234 + $0x40] sm:$0xff] %v806
        %839 = vst [vmem:[%s234 + $0x48] sm:$0xff] %v807
        %840 = vst [vmem:[%s234 + $0x50] sm:$0xff] %v808
        %841 = vst [vmem:[%s234 + $0x58] sm:$0xff] %v809
        %842 = vst [vmem:[%s234 + $0x60] sm:$0xff] %v810
        %843 = vst [vmem:[%s234 + $0x68] sm:$0xff] %v811
        %844 = vst [vmem:[%s234 + $0x70] sm:$0xff] %v812
        %845 = vst [vmem:[%s234 + $0x78] sm:$0xff] %v813
        %846 = vst [vmem:[%s234 + $0x80] sm:$0xff] %v814
        %847 = vst [vmem:[%s234 + $0x88] sm:$0xff] %v815
        %848 = vst [vmem:[%s234 + $0x90] sm:$0xff] %v816
        %849 = vst [vmem:[%s234 + $0x98] sm:$0xff] %v817
        %850 = vst [vmem:[%s234 + $0xa0] sm:$0xff] %v818
        %851 = vst [vmem:[%s234 + $0xa8] sm:$0xff] %v819
        %852 = vst [vmem:[%s234 + $0xb0] sm:$0xff] %v820
        %853 = vst [vmem:[%s234 + $0xb8] sm:$0xff] %v821
        %854 = vst [vmem:[%s234 + $0xc0] sm:$0xff] %v822
        %855 = vst [vmem:[%s234 + $0xc8] sm:$0xff] %v823
        %856 = vst [vmem:[%s234 + $0xd0] sm:$0xff] %v824
        %857 = vst [vmem:[%s234 + $0xd8] sm:$0xff] %v825
        %858 = vst [vmem:[%s234 + $0xe0] sm:$0xff] %v826
        %859 = vst [vmem:[%s234 + $0xe8] sm:$0xff] %v827
        %860 = vst [vmem:[%s234 + $0xf0] sm:$0xff] %v828
        %861 = vst [vmem:[%s234 + $0xf8] sm:$0xff] %v829
        %v862 = vpack.c.bf16 %v799, %v798
        %v863 = vpack.c.bf16 %v801, %v800
        %v864 = vpack.c.bf16 %v803, %v802
        %v865 = vpack.c.bf16 %v805, %v804
        %v866 = vpack.c.bf16 %v807, %v806
        %v867 = vpack.c.bf16 %v809, %v808
        %v868 = vpack.c.bf16 %v811, %v810
        %v869 = vpack.c.bf16 %v813, %v812
        %v870 = vpack.c.bf16 %v815, %v814
        %v871 = vpack.c.bf16 %v817, %v816
        %v872 = vpack.c.bf16 %v819, %v818
        %v873 = vpack.c.bf16 %v821, %v820
        %v874 = vpack.c.bf16 %v823, %v822
        %v875 = vpack.c.bf16 %v825, %v824
        %v876 = vpack.c.bf16 %v827, %v826
        %v877 = vpack.c.bf16 %v829, %v828
        %v894 = vunpack.c.l.b16 %v862
        %v895 = vunpack.c.h.b16 %v862
        %v896 = vunpack.c.l.b16 %v863
        %v897 = vunpack.c.h.b16 %v863
        %v898 = vunpack.c.l.b16 %v864
        %v899 = vunpack.c.h.b16 %v864
        %v900 = vunpack.c.l.b16 %v865
        %v901 = vunpack.c.h.b16 %v865
        %v902 = vunpack.c.l.b16 %v866
        %v903 = vunpack.c.h.b16 %v866
        %v904 = vunpack.c.l.b16 %v867
        %v905 = vunpack.c.h.b16 %v867
        %v906 = vunpack.c.l.b16 %v868
        %v907 = vunpack.c.h.b16 %v868
        %v908 = vunpack.c.l.b16 %v869
        %v909 = vunpack.c.h.b16 %v869
        %v910 = vunpack.c.l.b16 %v870
        %v911 = vunpack.c.h.b16 %v870
        %v912 = vunpack.c.l.b16 %v871
        %v913 = vunpack.c.h.b16 %v871
        %v914 = vunpack.c.l.b16 %v872
        %v915 = vunpack.c.h.b16 %v872
        %v916 = vunpack.c.l.b16 %v873
        %v917 = vunpack.c.h.b16 %v873
        %v918 = vunpack.c.l.b16 %v874
        %v919 = vunpack.c.h.b16 %v874
        %v920 = vunpack.c.l.b16 %v875
        %v921 = vunpack.c.h.b16 %v875
        %v922 = vunpack.c.l.b16 %v876
        %v923 = vunpack.c.h.b16 %v876
        %v924 = vunpack.c.l.b16 %v877
        %v925 = vunpack.c.h.b16 %v877
        %v926 = vpack.c.b16 %v894, %v894
        %v927 = vpack.c.b16 %v895, %v895
        %v928 = vpack.c.b16 %v896, %v896
        %v929 = vpack.c.b16 %v897, %v897
        %v930 = vpack.c.b16 %v898, %v898
        %v931 = vpack.c.b16 %v899, %v899
        %v932 = vpack.c.b16 %v900, %v900
        %v933 = vpack.c.b16 %v901, %v901
        %v934 = vpack.c.b16 %v902, %v902
        %v935 = vpack.c.b16 %v903, %v903
        %v936 = vpack.c.b16 %v904, %v904
        %v937 = vpack.c.b16 %v905, %v905
        %v938 = vpack.c.b16 %v906, %v906
        %v939 = vpack.c.b16 %v907, %v907
        %v940 = vpack.c.b16 %v908, %v908
        %v941 = vpack.c.b16 %v909, %v909
        %v942 = vpack.c.b16 %v910, %v910
        %v943 = vpack.c.b16 %v911, %v911
        %v944 = vpack.c.b16 %v912, %v912
        %v945 = vpack.c.b16 %v913, %v913
        %v946 = vpack.c.b16 %v914, %v914
        %v947 = vpack.c.b16 %v915, %v915
        %v948 = vpack.c.b16 %v916, %v916
        %v949 = vpack.c.b16 %v917, %v917
        %v950 = vpack.c.b16 %v918, %v918
        %v951 = vpack.c.b16 %v919, %v919
        %v952 = vpack.c.b16 %v920, %v920
        %v953 = vpack.c.b16 %v921, %v921
        %v954 = vpack.c.b16 %v922, %v922
        %v955 = vpack.c.b16 %v923, %v923
        %v956 = vpack.c.b16 %v924, %v924
        %v957 = vpack.c.b16 %v925, %v925
        %990 = vst [vmem:[%s241] sm:$0xf] %v926
        %991 = vst [vmem:[%s241 + $0x4] sm:$0xf] %v927
        %992 = vst [vmem:[%s241 + $0x8] sm:$0xf] %v928
        %993 = vst [vmem:[%s241 + $0xc] sm:$0xf] %v929
        %994 = vst [vmem:[%s241 + $0x10] sm:$0xf] %v930
        %995 = vst [vmem:[%s241 + $0x14] sm:$0xf] %v931
        %996 = vst [vmem:[%s241 + $0x18] sm:$0xf] %v932
        %997 = vst [vmem:[%s241 + $0x1c] sm:$0xf] %v933
        %998 = vst [vmem:[%s241 + $0x20] sm:$0xf] %v934
        %999 = vst [vmem:[%s241 + $0x24] sm:$0xf] %v935
        %1000 = vst [vmem:[%s241 + $0x28] sm:$0xf] %v936
        %1001 = vst [vmem:[%s241 + $0x2c] sm:$0xf] %v937
        %1002 = vst [vmem:[%s241 + $0x30] sm:$0xf] %v938
        %1003 = vst [vmem:[%s241 + $0x34] sm:$0xf] %v939
        %1004 = vst [vmem:[%s241 + $0x38] sm:$0xf] %v940
        %1005 = vst [vmem:[%s241 + $0x3c] sm:$0xf] %v941
        %1006 = vst [vmem:[%s241 + $0x40] sm:$0xf] %v942
        %1007 = vst [vmem:[%s241 + $0x44] sm:$0xf] %v943
        %1008 = vst [vmem:[%s241 + $0x48] sm:$0xf] %v944
        %1009 = vst [vmem:[%s241 + $0x4c] sm:$0xf] %v945
        %1010 = vst [vmem:[%s241 + $0x50] sm:$0xf] %v946
        %1011 = vst [vmem:[%s241 + $0x54] sm:$0xf] %v947
        %1012 = vst [vmem:[%s241 + $0x58] sm:$0xf] %v948
        %1013 = vst [vmem:[%s241 + $0x5c] sm:$0xf] %v949
        %1014 = vst [vmem:[%s241 + $0x60] sm:$0xf] %v950
        %1015 = vst [vmem:[%s241 + $0x64] sm:$0xf] %v951
        %1016 = vst [vmem:[%s241 + $0x68] sm:$0xf] %v952
        %1017 = vst [vmem:[%s241 + $0x6c] sm:$0xf] %v953
        %1018 = vst [vmem:[%s241 + $0x70] sm:$0xf] %v954
        %1019 = vst [vmem:[%s241 + $0x74] sm:$0xf] %v955
        %1020 = vst [vmem:[%s241 + $0x78] sm:$0xf] %v956
        %1021 = vst [vmem:[%s241 + $0x7c] sm:$0xf] %v957
        %s1022 = sand.u32 %s102, 1
        %s1023 = scalar_lea.sflag [#allocation4], %s1022
        %s1024 = sand.u32 %s102, 1
        %s1025 = smul.addr %s1024, 256
        %s1026 = scalar_lea.vmem [#allocation7], %s1025
        %s1027 = sand.u32 %s128, 1
        %s1028 = scalar_lea.sflag [#allocation9], %s1027
        %s1029 = sand.u32 %s128, 1
        %s1030 = smul.addr %s1029, 128
        %s1031 = scalar_lea.vmem [#allocation8], %s1030
        // Predicated region
        $region41: #{tpu_custom_call.1} parent=31 // pred_check
          %p1032 = pneg %p112
        $region42: #{tpu_custom_call.1} parent=31 // pred_check_branch
          %1034 = sbr.rel (%p1032) target = $region44
        $region43: #{tpu_custom_call.1} parent=31 // pred_region
          %s1035 = smul.u32 32, %s26
          %s1037 = ssub.s32 4096, 4096
          %1038 = vsyncadd %s1023, %s1037
          %s1039 = smul.addr %s1035, 128
          %s1040 = scalar_lea.hbm %s3, %s1039
          %s1041 = sshll.u32 %s1026, 4
          %s1042 = int_to_ptr.vmem [resolvable:$true] %s1041
          %1047 = dma.vmem_to_hbm [thread:$0]  %s1042, 4096, %s1040, %s1023, 128, 128, 8
        $region44: #{tpu_custom_call.1} parent=31 // pred_fallthru
          _
        // Predicated region
        $region45: #{tpu_custom_call.1} parent=31 // pred_check
          %p1048 = pneg %p138
        $region46: #{tpu_custom_call.1} parent=31 // pred_check_branch
          %1050 = sbr.rel (%p1048) target = $region48
        $region47: #{tpu_custom_call.1} parent=31 // pred_region
          %s1051 = smul.u32 32, %s26
          %s1053 = ssub.s32 2048, 2048
          %1054 = vsyncadd %s1028, %s1053
          %s1055 = smul.addr %s1051, 64
          %s1056 = scalar_lea.hbm %s4, %s1055
          %s1057 = sshll.u32 %s1031, 4
          %s1058 = int_to_ptr.vmem [resolvable:$true] %s1057
          %1063 = dma.vmem_to_hbm [thread:$0]  %s1058, 2048, %s1056, %s1028, 64, 64, 4
        $region48: #{tpu_custom_call.1} parent=31 // pred_fallthru
          _
      $region32: #{tpu_custom_call.1} parent=5 // pred_fallthru
        _
      %p1064 = scmp.le.s32.totalorder 2, %s21
      // Predicated region
      $region49: #{tpu_custom_call.1} parent=5 // pred_check
        %p1065 = pneg %p1064
      $region50: #{tpu_custom_call.1} parent=5 // pred_check_branch
        %1067 = sbr.rel (%p1065) target = $region52
      $region51: #{tpu_custom_call.1} parent=5 // pred_region
        %s1068 = ssub.s32 %s21, 2
        // Predicated region
        $region53: #{tpu_custom_call.1} parent=51 // pred_check
          %p1069 = pneg %p118
        $region54: #{tpu_custom_call.1} parent=51 // pred_check_branch
          %1071 = sbr.rel (%p1069) target = $region56
        $region55: #{tpu_custom_call.1} parent=51 // pred_region
          %s1072 = sand.u32 %s103, 1
          %s1073 = scalar_lea.sflag [#allocation4], %s1072
          %s1074 = sand.u32 %s103, 1
          %s1075 = smul.addr %s1074, 256
          %s1076 = scalar_lea.vmem [#allocation7], %s1075
          %1077 = dma.done %s1073, 4096
        $region56: #{tpu_custom_call.1} parent=51 // pred_fallthru
          _
        // Predicated region
        $region57: #{tpu_custom_call.1} parent=51 // pred_check
          %p1078 = pneg %p144
        $region58: #{tpu_custom_call.1} parent=51 // pred_check_branch
          %1080 = sbr.rel (%p1078) target = $region60
        $region59: #{tpu_custom_call.1} parent=51 // pred_region
          %s1081 = sand.u32 %s129, 1
          %s1082 = scalar_lea.sflag [#allocation9], %s1081
          %s1083 = sand.u32 %s129, 1
          %s1084 = smul.addr %s1083, 128
          %s1085 = scalar_lea.vmem [#allocation8], %s1084
          %1086 = dma.done %s1082, 2048
        $region60: #{tpu_custom_call.1} parent=51 // pred_fallthru
          _
      $region52: #{tpu_custom_call.1} parent=5 // pred_fallthru
        _
    $region6: #{tpu_custom_call.1} parent=1 // loop_footer
      %s25 = sadd.s32 1, %s21
    $region7: #{tpu_custom_call.1} parent=1 // loop_footer_branch
      %20 = sbr.rel target = $region3
    $region8: #{tpu_custom_call.1} parent=1 // loop_exit
      _
    %1087 = vsyncpa [#allocation3], 1
    %s1088 = scalar_lea.sflag [#allocation3], 1
    %1089 = vsyncpa %s1088, 1
    %1090 = vsyncpa [#allocation6], 1
    %1091 = vsyncpa [#allocation4], 1
    %s1092 = scalar_lea.sflag [#allocation4], 1
    %1093 = vsyncpa %s1092, 1
    %1094 = vsyncpa [#allocation9], 1
    %s1095 = scalar_lea.sflag [#allocation9], 1
    %1096 = vsyncpa %s1095, 1

</llo_original>
